<compile_context>
chip_gen: v6e
topology: v6e:2x2x1
jax: 0.10.0
libtpu: 0.0.40
codegen_flags: <defaults>
</compile_context>

<pallas_src>
import jax
import jax.numpy as jnp
from jax.experimental import pallas as pl
from jax.experimental.pallas import tpu as pltpu


LANE = 128                      # TPU lane width (last-dim vreg width)
_TILE_TARGET_BYTES = 2 << 20    # ~2 MiB per input tile -> ~8 MiB resident w/ double buffering


def noise_gate_kernel(x_ref, noise_ref, eps_ref, out_ref):
    # noise_ref, eps_ref: (1, C); x_ref, out_ref: (TB, C)
    noise = (noise_ref[...] * eps_ref[...]).astype(x_ref.dtype)  # tiny (1, C) VPU mul
    out_ref[...] = x_ref[...] + noise                            # implicit broadcast over rows


def _choose_block_rows(n_rows, n_cols, itemsize):
    """Rows per tile: ~2 MiB, multiple of 8 (or the full row count)."""
    rows = max(1, _TILE_TARGET_BYTES // max(1, n_cols * itemsize))
    if rows >= n_rows:
        return n_rows            # full extent -> always a legal block dim
    return max(8, (rows // 8) * 8)


def noise_gate(x, noise_param, eps):
    """x: (..., F); noise_param, eps: (F,). Returns x + noise_param * eps."""
    orig_shape = x.shape
    F = orig_shape[-1]
    x2 = x.reshape(-1, F)
    B = x2.shape[0]
    N = B * F

    trailing_pad = 0
    folded = False
    if F % LANE == 0:
        # Already lane-dense.
        xr = x2
        noise_row = noise_param.reshape(1, F)
        eps_row = eps.reshape(1, F)
    elif (LANE % F == 0) and (N % LANE == 0):
        # Fold consecutive batch rows into the lane axis (pure layout plumbing).
        reps = LANE // F
        xr = x2.reshape(N // LANE, LANE)
        noise_row = jnp.tile(noise_param, reps).reshape(1, LANE)
        eps_row = jnp.tile(eps, reps).reshape(1, LANE)
        folded = True
    else:
        # Zero-pad the feature dim to a multiple of 128 (padded lanes add 0).
        Fp = ((F + LANE - 1) // LANE) * LANE
        trailing_pad = Fp - F
        xr = jnp.pad(x2, ((0, 0), (0, trailing_pad)))
        noise_row = jnp.pad(noise_param, (0, trailing_pad)).reshape(1, Fp)
        eps_row = jnp.pad(eps, (0, trailing_pad)).reshape(1, Fp)

    R, C = xr.shape
    TB = _choose_block_rows(R, C, jnp.dtype(xr.dtype).itemsize)
    grid = (pl.cdiv(R, TB),)

    out2 = pl.pallas_call(
        noise_gate_kernel,
        out_shape=jax.ShapeDtypeStruct((R, C), x.dtype),
        grid=grid,
        in_specs=[
            pl.BlockSpec((TB, C), lambda i: (i, 0)),   # x tile (double-buffered)
            pl.BlockSpec((1, C), lambda i: (0, 0)),    # noise row, resident across grid
            pl.BlockSpec((1, C), lambda i: (0, 0)),    # eps row, resident across grid
        ],
        out_specs=pl.BlockSpec((TB, C), lambda i: (i, 0)),
        compiler_params=pltpu.CompilerParams(
            dimension_semantics=("parallel",),         # lets v7x shard rows across its 2 TCs
            vmem_limit_bytes=32 << 20,                 # explicit scoped-VMEM budget (all gens)
        ),
    )(xr, noise_row, eps_row)

    if folded:
        out2 = out2.reshape(B, F)
    elif trailing_pad:
        out2 = out2[:, :F]
    return out2.reshape(orig_shape)


if __name__ == "__main__":
    batch, n_features = 8, 32
    noise_level = 0.017

    key = jax.random.PRNGKey(0)
    kx, keps = jax.random.split(key)

    # Example input
    x = jax.random.normal(kx, (batch, n_features), dtype=jnp.float32)

    # nn.Parameter(torch.full((n_features,), noise_level))
    noise_param = jnp.full((n_features,), noise_level, dtype=jnp.float32)

    # self.n_eps.data.normal_() -> fresh standard-normal draw each forward call
    # TODO(synk): caller must thread a new PRNG key per forward to match normal_().
    eps = jax.random.normal(keps, (n_features,), dtype=jnp.float32)

    out = noise_gate(x, noise_param, eps)
    out = jax.block_until_ready(out)

    # Pure-JAX reference check of the forward semantics
    ref = x + noise_param * eps
    assert out.shape == (batch, n_features)
    assert out.dtype == x.dtype
    assert jnp.allclose(out, ref, atol=1e-6), "kernel output mismatch vs reference"

    print("KERNEL_OK")
</pallas_src>

<mosaic_0001>
module attributes {stable_mosaic.version = 11 : i64} {
  func.func @noise_gate_kernel(%arg0: i32, %arg1: memref<2x128xf32, #tpu.memory_space<vmem>>, %arg2: memref<1x128xf32, #tpu.memory_space<vmem>>, %arg3: memref<1x128xf32, #tpu.memory_space<vmem>>, %arg4: memref<2x128xf32, #tpu.memory_space<vmem>>) attributes {dimension_semantics = [#tpu.dimension_semantics<parallel>], iteration_bounds = array<i64: 1>, scalar_prefetch = 0 : i64, scratch_operands = 0 : i64, tpu.core_type = #tpu.core_type<tc>, window_params = [{transform_indices = @transform_0, window_bounds = array<i64: 2, 128>}, {pipeline_mode = #tpu.pipeline_mode<synchronous>, transform_indices = @transform_1, window_bounds = array<i64: 1, 128>}, {pipeline_mode = #tpu.pipeline_mode<synchronous>, transform_indices = @transform_2, window_bounds = array<i64: 1, 128>}, {transform_indices = @transform_3, window_bounds = array<i64: 2, 128>}]} {
    %c0 = arith.constant 0 : index
    %c0_0 = arith.constant 0 : index
    %0 = vector.load %arg2[%c0, %c0_0] : memref<1x128xf32, #tpu.memory_space<vmem>>, vector<1x128xf32>
    %c0_1 = arith.constant 0 : index
    %c0_2 = arith.constant 0 : index
    %1 = vector.load %arg3[%c0_1, %c0_2] : memref<1x128xf32, #tpu.memory_space<vmem>>, vector<1x128xf32>
    %2 = arith.mulf %0, %1 : vector<1x128xf32>
    %c0_3 = arith.constant 0 : index
    %c0_4 = arith.constant 0 : index
    %3 = vector.load %arg1[%c0_3, %c0_4] : memref<2x128xf32, #tpu.memory_space<vmem>>, vector<2x128xf32>
    %4 = vector.broadcast %2 : vector<1x128xf32> to vector<2x128xf32>
    %5 = arith.addf %3, %4 : vector<2x128xf32>
    %c0_5 = arith.constant 0 : index
    %c0_6 = arith.constant 0 : index
    %6 = vector.load %arg4[%c0_5, %c0_6] : memref<2x128xf32, #tpu.memory_space<vmem>>, vector<2x128xf32>
    tpu.vector_store %arg4[%c0_5, %c0_6], %5 {strides = array<i32>} : memref<2x128xf32, #tpu.memory_space<vmem>>, vector<2x128xf32>,
    return
  }
  func.func @transform_0(%arg0: i32) -> (i32, i32) {
    %c0_i32 = arith.constant 0 : i32
    %c0_i32_0 = arith.constant 0 : i32
    return %arg0, %c0_i32 : i32, i32
  }
  func.func @transform_1(%arg0: i32) -> (i32, i32) {
    %c0_i32 = arith.constant 0 : i32
    %c0_i32_0 = arith.constant 0 : i32
    %c0_i32_1 = arith.constant 0 : i32
    return %c0_i32, %c0_i32_0 : i32, i32
  }
  func.func @transform_2(%arg0: i32) -> (i32, i32) {
    %c0_i32 = arith.constant 0 : i32
    %c0_i32_0 = arith.constant 0 : i32
    %c0_i32_1 = arith.constant 0 : i32
    return %c0_i32, %c0_i32_0 : i32, i32
  }
  func.func @transform_3(%arg0: i32) -> (i32, i32) {
    %c0_i32 = arith.constant 0 : i32
    %c0_i32_0 = arith.constant 0 : i32
    return %arg0, %c0_i32 : i32, i32
  }
}

</mosaic_0001>

<llo_original>
// kernel: tpu_custom_call.1
$region0: #{tpu_custom_call.1}
  #allocation0 [shape = 'u32[]', space=smem, size = 0x4, offset = 0x4, fixed_abs, tag = 'smem constant byte address 0x4 - core index']
  #allocation1 [shape = 'u32[144,128]{1,0:T(1,128)}', space=vmem, size = 0x12000, scoped, tag = 'internal scratch']
  %s0 = inlined_call_operand.hbm [shape: f32[2,128], index: 0, kind: input, shape index: {}]
  %s1 = inlined_call_operand.vmem [shape: f32[1,128], index: 1, kind: input, shape index: {}]
  %s2 = inlined_call_operand.vmem [shape: f32[1,128], index: 2, kind: input, shape index: {}]
  %s3 = inlined_call_operand.hbm [shape: f32[2,128], index: 3, kind: output, shape index: {}]
  %s4 = sld [smem:[#allocation0]]
  $region26: #{tpu_custom_call.1} parent=0
    _
  %s6 = ssub.s32 1, %s4
  %s7 = scalar_select 0, %s6, %s4
  $region1: #{tpu_custom_call.1} parent=0
    #allocation2 [shape = 'u8[1024]{0}', space=vmem, size = 0x400, scoped, tag = 'input window, operand 0, single buffered']
    #allocation3 [shape = 's32[1]{0}', space=sflag, size = 0x4, scoped, tag = 'scoped memory for tpu_custom_call.1']
    #allocation4 [shape = 's32[1]{0}', space=sflag, size = 0x4, scoped, tag = 'scoped memory for tpu_custom_call.1']
    #allocation5 [shape = 'u8[1024]{0}', space=vmem, size = 0x400, scoped, tag = 'output window, operand 0, single buffered']
    %8 = vsyncpa [#allocation3], 0
    %9 = vsyncpa [#allocation4], 0
    // Predicated region
    $region2: #{tpu_custom_call.1} parent=1 // pred_check
      _
    $region3: #{tpu_custom_call.1} parent=1 // pred_check_branch
      %11 = sbr.rel (0) target = $region5
    $region4: #{tpu_custom_call.1} parent=1 // pred_region
      %s13 = ssub.s32 32, 32
      %14 = vsyncadd [#allocation3], %s13
      %s16 = sshll.u32 [#allocation2], 4
      %s17 = int_to_ptr.vmem [resolvable:$true] %s16
      %19 = dma.hbm_to_vmem [thread:$0]  %s0, 32, %s17, [#allocation3]
    $region5: #{tpu_custom_call.1} parent=1 // pred_fallthru
      _
    // Predicated region
    $region6: #{tpu_custom_call.1} parent=1 // pred_check
      _
    $region7: #{tpu_custom_call.1} parent=1 // pred_check_branch
      %21 = sbr.rel (0) target = $region9
    $region8: #{tpu_custom_call.1} parent=1 // pred_region
      _
    $region9: #{tpu_custom_call.1} parent=1 // pred_fallthru
      _
    // Predicated region
    $region10: #{tpu_custom_call.1} parent=1 // pred_check
      _
    $region11: #{tpu_custom_call.1} parent=1 // pred_check_branch
      %23 = sbr.rel (0) target = $region13
    $region12: #{tpu_custom_call.1} parent=1 // pred_region
      _
    $region13: #{tpu_custom_call.1} parent=1 // pred_fallthru
      _
    // Predicated region
    $region14: #{tpu_custom_call.1} parent=1 // pred_check
      _
    $region15: #{tpu_custom_call.1} parent=1 // pred_check_branch
      %25 = sbr.rel (0) target = $region17
    $region16: #{tpu_custom_call.1} parent=1 // pred_region
      %26 = dma.done [#allocation3], 32
    $region17: #{tpu_custom_call.1} parent=1 // pred_fallthru
      _
    %v27 = vld [vmem:[%s1] sm:$0x1]
    %v28 = vld [vmem:[%s2] sm:$0x1]
    %v29 = vmul.f32 %v27, %v28
    %v30 = vld [vmem:[#allocation2] sm:$0x3]
    %v32 = vlaneseq
    %v33 = vshrl.u32 %v32, 7
    %v34 = vsub.s32 0, %v33
    %v35 = vrot.slane %v29, %v34
    %v37 = vadd.f32 %v30, %v35
    %38 = vst [vmem:[#allocation5] sm:$0x3] %v37
    // Predicated region
    $region18: #{tpu_custom_call.1} parent=1 // pred_check
      _
    $region19: #{tpu_custom_call.1} parent=1 // pred_check_branch
      %40 = sbr.rel (0) target = $region21
    $region20: #{tpu_custom_call.1} parent=1 // pred_region
      %s42 = ssub.s32 32, 32
      %43 = vsyncadd [#allocation4], %s42
      %s45 = sshll.u32 [#allocation5], 4
      %s46 = int_to_ptr.vmem [resolvable:$true] %s45
      %48 = dma.vmem_to_hbm [thread:$0]  %s46, 32, %s3, [#allocation4]
    $region21: #{tpu_custom_call.1} parent=1 // pred_fallthru
      _
    // Predicated region
    $region22: #{tpu_custom_call.1} parent=1 // pred_check
      _
    $region23: #{tpu_custom_call.1} parent=1 // pred_check_branch
      %50 = sbr.rel (0) target = $region25
    $region24: #{tpu_custom_call.1} parent=1 // pred_region
      %51 = dma.done [#allocation4], 32
    $region25: #{tpu_custom_call.1} parent=1 // pred_fallthru
      _
    %52 = vsyncpa [#allocation3], 1
    %53 = vsyncpa [#allocation4], 1

</llo_original>
